<compile_context>
chip_gen: v7x
topology: tpu7x:2x2x1
jax: 0.10.0
libtpu: 0.0.40
codegen_flags: <defaults>
</compile_context>

<pallas_src>
import functools

import jax
import jax.numpy as jnp
from jax.experimental import pallas as pl
from jax.experimental.pallas import tpu as pltpu

# TODO(synk): log_det_jacobian is a separate method, not part of forward(); not implemented here.


def _sublane_multiple(dtype) -> int:
    itemsize = jnp.dtype(dtype).itemsize
    return {4: 8, 2: 16, 1: 32}.get(itemsize, 8)


def planar_flow_kernel(z_ref, w_ref, u_ref, b_ref, o_ref, *, fold, dim):
    """Row-wise planar flow on a (TR, fold*dim) block.

    fold > 1 means `fold` consecutive logical rows are packed along the
    128-lane axis (lane-dense loads/stores); each dim-wide lane chunk is an
    independent logical row. Compute is in f32 regardless of I/O dtype.
    """
    b = b_ref[0]                                 # scalar from SMEM
    w = w_ref[...].astype(jnp.float32)           # (1, dim)   VMEM
    u = u_ref[...].astype(jnp.float32)           # (1, dim)   VMEM
    z = z_ref[...].astype(jnp.float32)           # (TR, fold*dim)

    chunks = []
    for j in range(fold):                        # small static python loop
        zj = z[:, j * dim:(j + 1) * dim]         # (TR, dim) static lane slice
        wzb = jnp.sum(zj * w, axis=-1, keepdims=True) + b   # VPU mul + XLU reduce
        chunks.append(zj + u * jnp.tanh(wzb))               # EUP tanh + VPU
    out = chunks[0] if fold == 1 else jnp.concatenate(chunks, axis=-1)
    o_ref[...] = out.astype(o_ref.dtype)


def planar_flow(z, w, b, u, *, tile_rows=1024):
    """Pallas TPU PlanarFlow.forward.

    z: (N, D) float array (any float dtype; kept as I/O dtype).
    w: (D,), b: (1,), u: (D,) parameters (cast to f32 -- tiny).
    tile_rows: rows (of the folded layout) per grid step; sweepable.
    """
    n, d = z.shape
    io_dtype = z.dtype
    itemsize = jnp.dtype(io_dtype).itemsize

    # Lane-dense fold: pack 128 // D logical rows into the lane axis.
    fold = (128 // d) if (d < 128 and 128 % d == 0) else 1
    d_lane = d * fold

    n_pad = (-n) % fold                          # a few zero rows so rows fold evenly
    zf = jnp.pad(z, ((0, n_pad), (0, 0))) if n_pad else z
    n_rows = (n + n_pad) // fold
    zf = zf.reshape(n_rows, d_lane)

    # Row tiling: large blocks amortize per-step pipeline overhead.
    sub = _sublane_multiple(io_dtype)
    if tile_rows >= n_rows:
        tr = n_rows                              # single full-extent block (always legal)
    else:
        tr = max(sub, (tile_rows // sub) * sub)  # keep sublane-packing alignment
    # Ragged last block (grid = cdiv) is clipped by Pallas on writeback.
    grid = (pl.cdiv(n_rows, tr),)

    w2 = w.reshape(1, d).astype(jnp.float32)
    u2 = u.reshape(1, d).astype(jnp.float32)
    b1 = b.reshape(1).astype(jnp.float32)

    # VMEM budget: in + out blocks, double-buffered, plus params/slack.
    # Capped at 48 MiB so it stays safe on v7x (64 MiB physical per TC).
    blk_bytes = tr * d_lane * itemsize
    vmem_limit = int(min(max(4 * blk_bytes + (1 << 20), 32 << 20), 48 << 20))

    cost = pl.CostEstimate(
        flops=4 * n * d,
        transcendentals=n,
        bytes_accessed=2 * n * d * itemsize + (2 * d + 1) * 4,
    )

    kernel = functools.partial(planar_flow_kernel, fold=fold, dim=d)

    out = pl.pallas_call(
        kernel,
        out_shape=jax.ShapeDtypeStruct((n_rows, d_lane), io_dtype),
        grid_spec=pltpu.PrefetchScalarGridSpec(
            num_scalar_prefetch=0,
            grid=grid,
            in_specs=[
                pl.BlockSpec((tr, d_lane), lambda i: (i, 0)),
                # Constant-index parameter tiles (tiny; re-DMA cost negligible).
                pl.BlockSpec((1, d), lambda i: (0, 0)),
                pl.BlockSpec((1, d), lambda i: (0, 0)),
                # Loop-invariant scalar -> SMEM (frees a vreg / vld slot).
                pl.BlockSpec(memory_space=pltpu.MemorySpace.SMEM),
            ],
            out_specs=pl.BlockSpec((tr, d_lane), lambda i: (i, 0)),
        ),
        compiler_params=pltpu.CompilerParams(
            dimension_semantics=("parallel",),   # megacore / v7x 2-TC sharding
            vmem_limit_bytes=vmem_limit,
        ),
        cost_estimate=cost,
    )(zf, w2, u2, b1)

    out = out.reshape(n + n_pad, d)
    if n_pad:
        out = out[:n]
    return out


def planar_flow_ref(z, w, b, u):
    zf = z.astype(jnp.float32)
    wzb = jnp.sum(w * zf, axis=1) + b[0]
    return (zf + u * jnp.tanh(wzb)[:, None]).astype(z.dtype)


if __name__ == "__main__":
    dim = 32
    batch = 16

    key = jax.random.PRNGKey(0)
    k_w, k_b, k_u, k_z = jax.random.split(key, 4)
    # Deterministic parameter init (mimics torch.randn shapes from __init__).
    w = jax.random.normal(k_w, (dim,), dtype=jnp.float32)
    b = jax.random.normal(k_b, (1,), dtype=jnp.float32)
    u = jax.random.normal(k_u, (dim,), dtype=jnp.float32)
    z = jax.random.normal(k_z, (batch, dim), dtype=jnp.float32)

    out = planar_flow(z, w, b, u)
    out = jax.block_until_ready(out)

    ref = planar_flow_ref(z, w, b, u)
    assert out.shape == (batch, dim)
    assert out.dtype == z.dtype
    assert jnp.allclose(out, ref, atol=1e-5, rtol=1e-5)
    print("KERNEL_OK")
</pallas_src>

<mosaic_0001>
module attributes {stable_mosaic.version = 11 : i64} {
  func.func @planar_flow_kernel(%arg0: i32, %arg1: memref<4x128xf32, #tpu.memory_space<vmem>>, %arg2: memref<1x32xf32, #tpu.memory_space<vmem>>, %arg3: memref<1x32xf32, #tpu.memory_space<vmem>>, %arg4: memref<1xf32, #tpu.memory_space<smem>>, %arg5: memref<4x128xf32, #tpu.memory_space<vmem>>) attributes {dimension_semantics = [#tpu.dimension_semantics<parallel>], iteration_bounds = array<i64: 1>, scalar_prefetch = 0 : i64, scratch_operands = 0 : i64, tpu.core_type = #tpu.core_type<tc>, window_params = [{transform_indices = @transform_0, window_bounds = array<i64: 4, 128>}, {pipeline_mode = #tpu.pipeline_mode<synchronous>, transform_indices = @transform_1, window_bounds = array<i64: 1, 32>}, {pipeline_mode = #tpu.pipeline_mode<synchronous>, transform_indices = @transform_2, window_bounds = array<i64: 1, 32>}, {transform_indices = @transform_3, window_bounds = array<i64: 1>}, {transform_indices = @transform_4, window_bounds = array<i64: 4, 128>}]} {
    %c0 = arith.constant 0 : index
    %0 = memref.load %arg4[%c0] : memref<1xf32, #tpu.memory_space<smem>>
    %c0_0 = arith.constant 0 : index
    %c0_1 = arith.constant 0 : index
    %1 = vector.load %arg2[%c0_0, %c0_1] : memref<1x32xf32, #tpu.memory_space<vmem>>, vector<1x32xf32>
    %c0_2 = arith.constant 0 : index
    %c0_3 = arith.constant 0 : index
    %2 = vector.load %arg3[%c0_2, %c0_3] : memref<1x32xf32, #tpu.memory_space<vmem>>, vector<1x32xf32>
    %c0_4 = arith.constant 0 : index
    %c0_5 = arith.constant 0 : index
    %3 = vector.load %arg1[%c0_4, %c0_5] : memref<4x128xf32, #tpu.memory_space<vmem>>, vector<4x128xf32>
    %4 = vector.extract_strided_slice %3 {offsets = [0, 0], sizes = [4, 32], strides = [1, 1]} : vector<4x128xf32> to vector<4x32xf32>
    %5 = vector.broadcast %1 : vector<1x32xf32> to vector<4x32xf32>
    %6 = arith.mulf %4, %5 : vector<4x32xf32>
    %cst = arith.constant dense<0.000000e+00> : vector<4xf32>
    %7 = vector.multi_reduction <add>, %6, %cst [1] : vector<4x32xf32> to vector<4xf32>
    %8 = vector.shape_cast %7 : vector<4xf32> to vector<4x1xf32>
    %9 = vector.broadcast %0 : f32 to vector<4x1xf32>
    %10 = arith.addf %8, %9 : vector<4x1xf32>
    %11 = math.tanh %10 : vector<4x1xf32>
    %12 = vector.broadcast %2 : vector<1x32xf32> to vector<4x32xf32>
    %13 = vector.broadcast %11 : vector<4x1xf32> to vector<4x32xf32>
    %14 = arith.mulf %12, %13 : vector<4x32xf32>
    %15 = arith.addf %4, %14 : vector<4x32xf32>
    %16 = vector.extract_strided_slice %3 {offsets = [0, 32], sizes = [4, 32], strides = [1, 1]} : vector<4x128xf32> to vector<4x32xf32>
    %17 = vector.broadcast %1 : vector<1x32xf32> to vector<4x32xf32>
    %18 = arith.mulf %16, %17 : vector<4x32xf32>
    %cst_6 = arith.constant dense<0.000000e+00> : vector<4xf32>
    %19 = vector.multi_reduction <add>, %18, %cst_6 [1] : vector<4x32xf32> to vector<4xf32>
    %20 = vector.shape_cast %19 : vector<4xf32> to vector<4x1xf32>
    %21 = vector.broadcast %0 : f32 to vector<4x1xf32>
    %22 = arith.addf %20, %21 : vector<4x1xf32>
    %23 = math.tanh %22 : vector<4x1xf32>
    %24 = vector.broadcast %2 : vector<1x32xf32> to vector<4x32xf32>
    %25 = vector.broadcast %23 : vector<4x1xf32> to vector<4x32xf32>
    %26 = arith.mulf %24, %25 : vector<4x32xf32>
    %27 = arith.addf %16, %26 : vector<4x32xf32>
    %28 = vector.extract_strided_slice %3 {offsets = [0, 64], sizes = [4, 32], strides = [1, 1]} : vector<4x128xf32> to vector<4x32xf32>
    %29 = vector.broadcast %1 : vector<1x32xf32> to vector<4x32xf32>
    %30 = arith.mulf %28, %29 : vector<4x32xf32>
    %cst_7 = arith.constant dense<0.000000e+00> : vector<4xf32>
    %31 = vector.multi_reduction <add>, %30, %cst_7 [1] : vector<4x32xf32> to vector<4xf32>
    %32 = vector.shape_cast %31 : vector<4xf32> to vector<4x1xf32>
    %33 = vector.broadcast %0 : f32 to vector<4x1xf32>
    %34 = arith.addf %32, %33 : vector<4x1xf32>
    %35 = math.tanh %34 : vector<4x1xf32>
    %36 = vector.broadcast %2 : vector<1x32xf32> to vector<4x32xf32>
    %37 = vector.broadcast %35 : vector<4x1xf32> to vector<4x32xf32>
    %38 = arith.mulf %36, %37 : vector<4x32xf32>
    %39 = arith.addf %28, %38 : vector<4x32xf32>
    %40 = vector.extract_strided_slice %3 {offsets = [0, 96], sizes = [4, 32], strides = [1, 1]} : vector<4x128xf32> to vector<4x32xf32>
    %41 = vector.broadcast %1 : vector<1x32xf32> to vector<4x32xf32>
    %42 = arith.mulf %40, %41 : vector<4x32xf32>
    %cst_8 = arith.constant dense<0.000000e+00> : vector<4xf32>
    %43 = vector.multi_reduction <add>, %42, %cst_8 [1] : vector<4x32xf32> to vector<4xf32>
    %44 = vector.shape_cast %43 : vector<4xf32> to vector<4x1xf32>
    %45 = vector.broadcast %0 : f32 to vector<4x1xf32>
    %46 = arith.addf %44, %45 : vector<4x1xf32>
    %47 = math.tanh %46 : vector<4x1xf32>
    %48 = vector.broadcast %2 : vector<1x32xf32> to vector<4x32xf32>
    %49 = vector.broadcast %47 : vector<4x1xf32> to vector<4x32xf32>
    %50 = arith.mulf %48, %49 : vector<4x32xf32>
    %51 = arith.addf %40, %50 : vector<4x32xf32>
    %52 = tpu.concatenate %15, %27, %39, %51 in 1 : vector<4x32xf32>, vector<4x32xf32>, vector<4x32xf32>, vector<4x32xf32> -> vector<4x128xf32>
    %c0_9 = arith.constant 0 : index
    %c0_10 = arith.constant 0 : index
    %53 = vector.load %arg5[%c0_9, %c0_10] : memref<4x128xf32, #tpu.memory_space<vmem>>, vector<4x128xf32>
    tpu.vector_store %arg5[%c0_9, %c0_10], %52 {strides = array<i32>} : memref<4x128xf32, #tpu.memory_space<vmem>>, vector<4x128xf32>,
    return
  }
  func.func @transform_0(%arg0: i32) -> (i32, i32) {
    %c0_i32 = arith.constant 0 : i32
    %c0_i32_0 = arith.constant 0 : i32
    return %arg0, %c0_i32 : i32, i32
  }
  func.func @transform_1(%arg0: i32) -> (i32, i32) {
    %c0_i32 = arith.constant 0 : i32
    %c0_i32_0 = arith.constant 0 : i32
    %c0_i32_1 = arith.constant 0 : i32
    return %c0_i32, %c0_i32_0 : i32, i32
  }
  func.func @transform_2(%arg0: i32) -> (i32, i32) {
    %c0_i32 = arith.constant 0 : i32
    %c0_i32_0 = arith.constant 0 : i32
    %c0_i32_1 = arith.constant 0 : i32
    return %c0_i32, %c0_i32_0 : i32, i32
  }
  func.func @transform_3(%arg0: i32) -> i32 {
    %c0_i32 = arith.constant 0 : i32
    %c0_i32_0 = arith.constant 0 : i32
    return %c0_i32 : i32
  }
  func.func @transform_4(%arg0: i32) -> (i32, i32) {
    %c0_i32 = arith.constant 0 : i32
    %c0_i32_0 = arith.constant 0 : i32
    return %arg0, %c0_i32 : i32, i32
  }
}

</mosaic_0001>

<llo_original>
// kernel: tpu_custom_call.1
$region0: #{tpu_custom_call.1}
  #allocation0 [shape = 'u32[]', space=smem, size = 0x4, offset = 0x4, fixed_abs, tag = 'smem constant byte address 0x4 - core index']
  #allocation1 [shape = 'u32[144,128]{1,0:T(1,128)}', space=vmem, size = 0x12000, scoped, tag = 'internal scratch']
  #allocation2 [shape = 'f32[1]{0:T(128)S(6)}', space=smem, size = 0x200, scoped, tag = 'scoped memory for tpu_custom_call.1']
  %s0 = inlined_call_operand.hbm [shape: f32[4,128], index: 0, kind: input, shape index: {}]
  %s1 = inlined_call_operand.vmem [shape: f32[1,32], index: 1, kind: input, shape index: {}]
  %s2 = inlined_call_operand.vmem [shape: f32[1,32], index: 2, kind: input, shape index: {}]
  %s3 = inlined_call_operand.<no memory space> [shape: f32[1], index: 3, kind: input, shape index: {}]
  %s4 = inlined_call_operand.hbm [shape: f32[4,128], index: 4, kind: output, shape index: {}]
  %s5 = sld [smem:[#allocation0]]
  $region30: #{tpu_custom_call.1} parent=0
    _
  %s7 = ssub.s32 1, %s5
  %s8 = scalar_select 0, %s7, %s5
  %9 = sst [smem:[#allocation2]] %s3
  $region1: #{tpu_custom_call.1} parent=0
    #allocation3 [shape = 'u8[2048]{0}', space=vmem, size = 0x800, scoped, tag = 'input window, operand 0, single buffered']
    #allocation4 [shape = 's32[1]{0}', space=sflag, size = 0x4, scoped, tag = 'scoped memory for tpu_custom_call.1']
    #allocation5 [shape = 's32[1]{0}', space=sflag, size = 0x4, scoped, tag = 'scoped memory for tpu_custom_call.1']
    #allocation6 [shape = 'u8[2048]{0}', space=vmem, size = 0x800, scoped, tag = 'output window, operand 0, single buffered']
    %10 = vsyncpa [#allocation4], 0
    %11 = vsyncpa [#allocation5], 0
    // Predicated region
    $region2: #{tpu_custom_call.1} parent=1 // pred_check
      _
    $region3: #{tpu_custom_call.1} parent=1 // pred_check_branch
      %13 = sbr.rel (0) target = $region5
    $region4: #{tpu_custom_call.1} parent=1 // pred_region
      %s15 = ssub.s32 64, 64
      %16 = vsyncadd [#allocation4], %s15
      %s18 = sshll.u32 [#allocation3], 4
      %s19 = int_to_ptr.vmem [resolvable:$true] %s18
      %21 = dma.hbm_to_vmem [thread:$0]  %s0, 64, %s19, [#allocation4]
    $region5: #{tpu_custom_call.1} parent=1 // pred_fallthru
      _
    // Predicated region
    $region6: #{tpu_custom_call.1} parent=1 // pred_check
      _
    $region7: #{tpu_custom_call.1} parent=1 // pred_check_branch
      %23 = sbr.rel (0) target = $region9
    $region8: #{tpu_custom_call.1} parent=1 // pred_region
      _
    $region9: #{tpu_custom_call.1} parent=1 // pred_fallthru
      _
    // Predicated region
    $region10: #{tpu_custom_call.1} parent=1 // pred_check
      _
    $region11: #{tpu_custom_call.1} parent=1 // pred_check_branch
      %25 = sbr.rel (0) target = $region13
    $region12: #{tpu_custom_call.1} parent=1 // pred_region
      _
    $region13: #{tpu_custom_call.1} parent=1 // pred_fallthru
      _
    // Predicated region
    $region14: #{tpu_custom_call.1} parent=1 // pred_check
      _
    $region15: #{tpu_custom_call.1} parent=1 // pred_check_branch
      %27 = sbr.rel (0) target = $region17
    $region16: #{tpu_custom_call.1} parent=1 // pred_region
      _
    $region17: #{tpu_custom_call.1} parent=1 // pred_fallthru
      _
    // Predicated region
    $region18: #{tpu_custom_call.1} parent=1 // pred_check
      _
    $region19: #{tpu_custom_call.1} parent=1 // pred_check_branch
      %29 = sbr.rel (0) target = $region21
    $region20: #{tpu_custom_call.1} parent=1 // pred_region
      %30 = dma.done [#allocation4], 64
    $region21: #{tpu_custom_call.1} parent=1 // pred_fallthru
      _
    %s31 = sld [smem:[#allocation2]]
    %v32 = vld [vmem:[%s1] sm:$0x1]
    %v33 = vld [vmem:[%s2] sm:$0x1]
    %v34 = vld [vmem:[#allocation3] sm:$0xf]
    %v36 = vlaneseq
    %v37 = vshrl.u32 %v36, 7
    %v38 = vsub.s32 0, %v37
    %v39 = vrot.slane %v32, %v38
    %v41 = vmul.f32 %v34, %v39
    %vm42 = vcmask 257024
    %v43 = vsel %vm42, %v41, 0.0
    %44 = vadd.xlane.f32.xlu0 %v43
    %v45 = vpop.xlane.xlu0 %44
    %v46 = vstv %s31
    %v47 = vadd.f32 %v45, %v46
    %v48 = vtanh.pop %v47
    %v50 = vlaneseq
    %v51 = vshrl.u32 %v50, 7
    %v52 = vsub.s32 0, %v51
    %v53 = vrot.slane %v33, %v52
    %v55 = vmul.f32 %v53, %v48
    %v56 = vadd.f32 %v34, %v55
    %57 = vrot.lane.b32.xlu0 %v39, 32
    %v58 = vpop.permute.xlu0 %57
    %v60 = vmul.f32 %v34, %v58
    %62 = vrot.lane.b32.xlu0 %v60, 96
    %v63 = vpop.permute.xlu0 %62
    %v65 = vsel %vm42, %v63, 0.0
    %66 = vadd.xlane.f32.xlu0 %v65
    %v67 = vpop.xlane.xlu0 %66
    %v68 = vadd.f32 %v67, %v46
    %v69 = vtanh.pop %v68
    %v70 = vmul.f32 %v53, %v69
    %72 = vrot.lane.b32.xlu0 %v70, 32
    %v73 = vpop.permute.xlu0 %72
    %v75 = vadd.f32 %v34, %v73
    %76 = vrot.lane.b32.xlu0 %v39, 64
    %v77 = vpop.permute.xlu0 %76
    %v79 = vmul.f32 %v34, %v77
    %81 = vrot.lane.b32.xlu0 %v79, 64
    %v82 = vpop.permute.xlu0 %81
    %v84 = vsel %vm42, %v82, 0.0
    %85 = vadd.xlane.f32.xlu0 %v84
    %v86 = vpop.xlane.xlu0 %85
    %v87 = vadd.f32 %v86, %v46
    %v88 = vtanh.pop %v87
    %v89 = vmul.f32 %v53, %v88
    %91 = vrot.lane.b32.xlu0 %v89, 64
    %v92 = vpop.permute.xlu0 %91
    %v94 = vadd.f32 %v34, %v92
    %95 = vrot.lane.b32.xlu0 %v39, 96
    %v96 = vpop.permute.xlu0 %95
    %v98 = vmul.f32 %v34, %v96
    %100 = vrot.lane.b32.xlu0 %v98, 32
    %v101 = vpop.permute.xlu0 %100
    %v103 = vsel %vm42, %v101, 0.0
    %104 = vadd.xlane.f32.xlu0 %v103
    %v105 = vpop.xlane.xlu0 %104
    %v106 = vadd.f32 %v105, %v46
    %v107 = vtanh.pop %v106
    %v108 = vmul.f32 %v53, %v107
    %110 = vrot.lane.b32.xlu0 %v108, 96
    %v111 = vpop.permute.xlu0 %110
    %v113 = vadd.f32 %v34, %v111
    %vm114 = vcmask 261120
    %v115 = vsel %vm114, %v56, %v75
    %vm116 = vcmask 523264
    %v117 = vsel %vm116, %v115, %v94
    %vm118 = vcmask 785408
    %v119 = vsel %vm118, %v117, %v113
    %120 = vst [vmem:[#allocation6] sm:$0xf] %v119
    // Predicated region
    $region22: #{tpu_custom_call.1} parent=1 // pred_check
      _
    $region23: #{tpu_custom_call.1} parent=1 // pred_check_branch
      %122 = sbr.rel (0) target = $region25
    $region24: #{tpu_custom_call.1} parent=1 // pred_region
      %s124 = ssub.s32 64, 64
      %125 = vsyncadd [#allocation5], %s124
      %s127 = sshll.u32 [#allocation6], 4
      %s128 = int_to_ptr.vmem [resolvable:$true] %s127
      %130 = dma.vmem_to_hbm [thread:$0]  %s128, 64, %s4, [#allocation5]
    $region25: #{tpu_custom_call.1} parent=1 // pred_fallthru
      _
    // Predicated region
    $region26: #{tpu_custom_call.1} parent=1 // pred_check
      _
    $region27: #{tpu_custom_call.1} parent=1 // pred_check_branch
      %132 = sbr.rel (0) target = $region29
    $region28: #{tpu_custom_call.1} parent=1 // pred_region
      %133 = dma.done [#allocation5], 64
    $region29: #{tpu_custom_call.1} parent=1 // pred_fallthru
      _
    %134 = vsyncpa [#allocation4], 1
    %135 = vsyncpa [#allocation5], 1

</llo_original>
